<compile_context>
chip_gen: v6e
topology: v6e:2x2x1
jax: 0.10.0
libtpu: 0.0.40
codegen_flags: <defaults>
</compile_context>

<pallas_src>
import functools
import math

import jax
import jax.numpy as jnp
from jax.experimental import pallas as pl
from jax.experimental.pallas import tpu as pltpu


_LANE = 128
_SUBLANE = 8


def _cdiv(a, b):
    return -(-a // b)


def _round_down(x, m):
    return max(m, (x // m) * m)


def _vmem_budget(itemsize):
    """Returns (vmem_limit_bytes, per-block element budget) for this chip."""
    try:
        cap = getattr(pltpu.get_tpu_info(), "vmem_capacity_bytes", None)
    except Exception:
        cap = None
    if not cap:
        cap = 64 * 1024 * 1024  # conservative fallback (v7x per-TC VMEM)
    vmem_limit = min(int(cap * 3 // 4), 96 * 1024 * 1024)
    # Live bytes per block element: double-buffered input (2 * itemsize) plus
    # ~3 f32 copies for the in-kernel upcast / mask / exp intermediates.
    per_elem = 2 * itemsize + 3 * 4
    block_elem_budget = (vmem_limit * 3 // 4) // per_elem  # keep headroom
    return vmem_limit, int(block_elem_budget)


def _select_tiles(n, c, hw, block_elem_budget):
    """Pick (tn, tc, thw) honoring TPU block-shape rules.

    Output block (tn, tc): tn in {n} U multiples-of-8, tc in {c} U mult-of-128.
    Input block (tn, tc, thw): thw in {hw} U multiples-of-128.
    """
    tn_min = n if n < _SUBLANE else _SUBLANE
    tc_min = c if c < _LANE else _LANE

    if tn_min * tc_min * hw <= block_elem_budget:
        thw = hw  # whole spatial reduction in one pass
        max_tc = block_elem_budget // (tn_min * hw)
        if c <= max_tc:
            tc = c
            max_tn = block_elem_budget // (c * hw)
            tn = n if n <= max_tn else _round_down(max_tn, _SUBLANE)
        else:
            tc = _round_down(max_tc, _LANE)
            tn = tn_min
    else:
        # Large-spatial path: tile HW and accumulate online in-kernel.
        tn, tc = tn_min, tc_min
        thw = min(hw, _round_down(block_elem_budget // (tn * tc), _LANE))

    # Guarantee >= 2 grid steps along a "parallel" axis for non-trivial sizes
    # so v7x's second TensorCore has work and DMA/compute overlap exists.
    if _cdiv(n, tn) * _cdiv(c, tc) == 1 and n * c * hw >= (1 << 18):
        if tc == c and c >= 2 * _LANE:
            tc = _round_down(_cdiv(c, 2), _LANE)
        elif tn == n and n >= 2 * _SUBLANE:
            tn = _round_down(_cdiv(n, 2), _SUBLANE)
    return tn, tc, thw


def _lse_pool_kernel(x_ref, o_ref, m_sc, s_sc, *, r, inv_r, log_s2, hw, thw,
                     mask_hw):
    # x_ref block: (TN, TC, THW) with the spatial reduce axis on lanes.
    k = pl.program_id(2)

    @pl.when(k == 0)
    def _():
        m_sc[...] = jnp.full_like(m_sc, -jnp.inf)
        s_sc[...] = jnp.zeros_like(s_sc)

    x = x_ref[...].astype(jnp.float32)               # (TN, TC, THW)
    if mask_hw:
        # Ragged tail of the tiled HW axis: mask padded lanes with -inf so
        # they contribute exp(...) == 0 and never win the running max.
        col = jax.lax.broadcasted_iota(jnp.int32, x.shape, dimension=2)
        x = jnp.where(col + k * thw < hw, x, -jnp.inf)

    m_blk = jnp.max(x, axis=-1)                      # (TN, TC)   XLU reduce
    m_old = m_sc[...]
    m_new = jnp.maximum(m_old, m_blk)
    # Rescale running sum; exp(r*(-inf - finite)) == 0 covers the k == 0 init.
    alpha = jnp.exp(r * (m_old - m_new))
    e = jnp.exp(r * (x - m_new[..., None]))          # sub, mul, exp only
    s_sc[...] = alpha * s_sc[...] + jnp.sum(e, axis=-1)
    m_sc[...] = m_new

    @pl.when(k == pl.num_programs(2) - 1)
    def _():
        # p = 1/r * log(sum / W^2); 1/(W*W) folded in as -2*log(W).
        p = inv_r * (jnp.log(s_sc[...]) - log_s2)
        o_ref[...] = (m_sc[...] + p).astype(o_ref.dtype)


def lse_pool2d(x, r=3, *, _tile_override=None):
    """x: (N, C, H, W) -> (N, C). LSE pooling matching the PyTorch module."""
    n, c, h, w = x.shape
    hw = h * w
    itemsize = jnp.dtype(x.dtype).itemsize

    x_v = x.reshape(n, c, hw)  # free, contiguous view -- no extra HBM pass

    vmem_limit, block_elem_budget = _vmem_budget(itemsize)
    tn, tc, thw = _select_tiles(n, c, hw, block_elem_budget)
    if _tile_override is not None:  # testing hook for the tiled/ragged paths
        tn, tc, thw = _tile_override

    grid = (_cdiv(n, tn), _cdiv(c, tc), _cdiv(hw, thw))
    mask_hw = (hw % thw) != 0

    kernel = functools.partial(
        _lse_pool_kernel,
        r=float(r),
        inv_r=1.0 / float(r),
        # Matches the PyTorch module exactly: s = x.size()[3] == W, so the
        # normalizer is 1/(W*W) even when H != W.  Intentional -- do NOT "fix".
        log_s2=2.0 * math.log(float(w)),
        hw=hw,
        thw=thw,
        mask_hw=mask_hw,
    )

    return pl.pallas_call(
        kernel,
        out_shape=jax.ShapeDtypeStruct((n, c), x.dtype),
        grid_spec=pltpu.PrefetchScalarGridSpec(
            num_scalar_prefetch=0,
            grid=grid,
            in_specs=[pl.BlockSpec((tn, tc, thw), lambda i, j, k: (i, j, k))],
            out_specs=pl.BlockSpec((tn, tc), lambda i, j, k: (i, j)),
            scratch_shapes=[pltpu.VMEM((tn, tc), jnp.float32),   # running max
                            pltpu.VMEM((tn, tc), jnp.float32)],  # running sum
        ),
        compiler_params=pltpu.CompilerParams(
            dimension_semantics=("parallel", "parallel", "arbitrary"),
            vmem_limit_bytes=vmem_limit,
        ),
    )(x_v)


def lse_pool2d_ref(x, r=3):
    """Pure-JAX reference mirroring the PyTorch forward (incl. W-only s)."""
    n, c, h, w = x.shape
    x_max = jnp.max(x, axis=(2, 3), keepdims=True)                  # (N,C,1,1)
    p = (1.0 / r) * jnp.log(
        (1.0 / (w * w)) * jnp.sum(jnp.exp(r * (x - x_max)), axis=(2, 3)))
    return x_max.reshape(n, c) + p


if __name__ == "__main__":
    key = jax.random.PRNGKey(0)
    k0, k1, k2 = jax.random.split(key, 3)

    # Primary small-shape check (matches the module's expected NCHW input).
    N, C, H, W = 2, 4, 16, 16
    x = jax.random.normal(k0, (N, C, H, W), dtype=jnp.float32)
    out = jax.block_until_ready(lse_pool2d(x, r=3))
    ref = lse_pool2d_ref(x, r=3)
    assert out.shape == (N, C)
    assert jnp.allclose(out, ref, atol=1e-5, rtol=1e-5), (out, ref)

    # H != W (exercises the module's W-only normalizer quirk) and odd sizes.
    x2 = jax.random.normal(k1, (3, 8, 7, 5), dtype=jnp.float32)
    out2 = jax.block_until_ready(lse_pool2d(x2, r=3))
    ref2 = lse_pool2d_ref(x2, r=3)
    assert out2.shape == (3, 8)
    assert jnp.allclose(out2, ref2, atol=1e-5, rtol=1e-5), (out2, ref2)

    # Exercise the tiled-HW online-LSE path plus ragged C and HW boundary
    # blocks via the tiling override (keeps the test shape small).
    x3 = jax.random.normal(k2, (2, 200, 15, 20), dtype=jnp.float32)  # hw = 300
    out3 = jax.block_until_ready(
        lse_pool2d(x3, r=3, _tile_override=(2, 128, 128)))
    ref3 = lse_pool2d_ref(x3, r=3)
    assert out3.shape == (2, 200)
    assert jnp.allclose(out3, ref3, atol=1e-5, rtol=1e-5), (out3, ref3)

    print("KERNEL_OK")
</pallas_src>

<mosaic_0001>
module attributes {stable_mosaic.version = 11 : i64} {
  func.func @_lse_pool_kernel(%arg0: i32, %arg1: i32, %arg2: i32, %arg3: memref<2x4x256xf32, #tpu.memory_space<vmem>>, %arg4: memref<2x4xf32, #tpu.memory_space<vmem>>, %arg5: memref<2x4xf32, #tpu.memory_space<vmem>>, %arg6: memref<2x4xf32, #tpu.memory_space<vmem>>) attributes {dimension_semantics = [#tpu.dimension_semantics<parallel>, #tpu.dimension_semantics<parallel>, #tpu.dimension_semantics<arbitrary>], iteration_bounds = array<i64: 1, 1, 1>, scalar_prefetch = 0 : i64, scratch_operands = 2 : i64, tpu.core_type = #tpu.core_type<tc>, window_params = [{transform_indices = @transform_0, window_bounds = array<i64: 2, 4, 256>}, {transform_indices = @transform_1, window_bounds = array<i64: 2, 4>}]} {
    %c0_i32 = arith.constant 0 : i32
    %0 = arith.cmpi eq, %arg2, %c0_i32 : i32
    %1 = arith.extui %0 : i1 to i32
    %c0_i32_0 = arith.constant 0 : i32
    %2 = arith.cmpi ne, %1, %c0_i32_0 : i32
    scf.if %2 {
      %cst_16 = arith.constant 0xFF800000 : f32
      %26 = vector.broadcast %cst_16 : f32 to vector<2x4xf32>
      %c0_17 = arith.constant 0 : index
      %c0_18 = arith.constant 0 : index
      %27 = vector.load %arg5[%c0_17, %c0_18] : memref<2x4xf32, #tpu.memory_space<vmem>>, vector<2x4xf32>
      tpu.vector_store %arg5[%c0_17, %c0_18], %26 {strides = array<i32>} : memref<2x4xf32, #tpu.memory_space<vmem>>, vector<2x4xf32>,
      %cst_19 = arith.constant 0.000000e+00 : f32
      %28 = vector.broadcast %cst_19 : f32 to vector<2x4xf32>
      %c0_20 = arith.constant 0 : index
      %c0_21 = arith.constant 0 : index
      %29 = vector.load %arg6[%c0_20, %c0_21] : memref<2x4xf32, #tpu.memory_space<vmem>>, vector<2x4xf32>
      tpu.vector_store %arg6[%c0_20, %c0_21], %28 {strides = array<i32>} : memref<2x4xf32, #tpu.memory_space<vmem>>, vector<2x4xf32>,
    } else {
    }
    %c0 = arith.constant 0 : index
    %c0_1 = arith.constant 0 : index
    %c0_2 = arith.constant 0 : index
    %3 = vector.load %arg3[%c0, %c0_1, %c0_2] : memref<2x4x256xf32, #tpu.memory_space<vmem>>, vector<2x4x256xf32>
    %cst = arith.constant dense<0xFF800000> : vector<2x4xf32>
    %4 = vector.multi_reduction <maximumf>, %3, %cst [2] : vector<2x4x256xf32> to vector<2x4xf32>
    %c0_3 = arith.constant 0 : index
    %c0_4 = arith.constant 0 : index
    %5 = vector.load %arg5[%c0_3, %c0_4] : memref<2x4xf32, #tpu.memory_space<vmem>>, vector<2x4xf32>
    %6 = arith.maximumf %5, %4 : vector<2x4xf32>
    %7 = arith.subf %5, %6 : vector<2x4xf32>
    %cst_5 = arith.constant 3.000000e+00 : f32
    %8 = vector.broadcast %cst_5 : f32 to vector<2x4xf32>
    %9 = arith.mulf %8, %7 : vector<2x4xf32>
    %10 = math.exp %9 : vector<2x4xf32>
    %11 = vector.shape_cast %6 : vector<2x4xf32> to vector<2x4x1xf32>
    %12 = vector.broadcast %11 : vector<2x4x1xf32> to vector<2x4x256xf32>
    %13 = arith.subf %3, %12 : vector<2x4x256xf32>
    %cst_6 = arith.constant 3.000000e+00 : f32
    %14 = vector.broadcast %cst_6 : f32 to vector<2x4x256xf32>
    %15 = arith.mulf %14, %13 : vector<2x4x256xf32>
    %16 = math.exp %15 : vector<2x4x256xf32>
    %c0_7 = arith.constant 0 : index
    %c0_8 = arith.constant 0 : index
    %17 = vector.load %arg6[%c0_7, %c0_8] : memref<2x4xf32, #tpu.memory_space<vmem>>, vector<2x4xf32>
    %18 = arith.mulf %10, %17 : vector<2x4xf32>
    %cst_9 = arith.constant dense<0.000000e+00> : vector<2x4xf32>
    %19 = vector.multi_reduction <add>, %16, %cst_9 [2] : vector<2x4x256xf32> to vector<2x4xf32>
    %20 = arith.addf %18, %19 : vector<2x4xf32>
    %c0_10 = arith.constant 0 : index
    %c0_11 = arith.constant 0 : index
    %21 = vector.load %arg6[%c0_10, %c0_11] : memref<2x4xf32, #tpu.memory_space<vmem>>, vector<2x4xf32>
    tpu.vector_store %arg6[%c0_10, %c0_11], %20 {strides = array<i32>} : memref<2x4xf32, #tpu.memory_space<vmem>>, vector<2x4xf32>,
    %c0_12 = arith.constant 0 : index
    %c0_13 = arith.constant 0 : index
    %22 = vector.load %arg5[%c0_12, %c0_13] : memref<2x4xf32, #tpu.memory_space<vmem>>, vector<2x4xf32>
    tpu.vector_store %arg5[%c0_12, %c0_13], %6 {strides = array<i32>} : memref<2x4xf32, #tpu.memory_space<vmem>>, vector<2x4xf32>,
    %c0_i32_14 = arith.constant 0 : i32
    %23 = arith.cmpi eq, %arg2, %c0_i32_14 : i32
    %24 = arith.extui %23 : i1 to i32
    %c0_i32_15 = arith.constant 0 : i32
    %25 = arith.cmpi ne, %24, %c0_i32_15 : i32
    scf.if %25 {
      %c0_16 = arith.constant 0 : index
      %c0_17 = arith.constant 0 : index
      %26 = vector.load %arg6[%c0_16, %c0_17] : memref<2x4xf32, #tpu.memory_space<vmem>>, vector<2x4xf32>
      %27 = math.log %26 : vector<2x4xf32>
      %cst_18 = arith.constant 5.54517746 : f32
      %28 = vector.broadcast %cst_18 : f32 to vector<2x4xf32>
      %29 = arith.subf %27, %28 : vector<2x4xf32>
      %cst_19 = arith.constant 0.333333343 : f32
      %30 = vector.broadcast %cst_19 : f32 to vector<2x4xf32>
      %31 = arith.mulf %30, %29 : vector<2x4xf32>
      %c0_20 = arith.constant 0 : index
      %c0_21 = arith.constant 0 : index
      %32 = vector.load %arg5[%c0_20, %c0_21] : memref<2x4xf32, #tpu.memory_space<vmem>>, vector<2x4xf32>
      %33 = arith.addf %32, %31 : vector<2x4xf32>
      %c0_22 = arith.constant 0 : index
      %c0_23 = arith.constant 0 : index
      %34 = vector.load %arg4[%c0_22, %c0_23] : memref<2x4xf32, #tpu.memory_space<vmem>>, vector<2x4xf32>
      tpu.vector_store %arg4[%c0_22, %c0_23], %33 {strides = array<i32>} : memref<2x4xf32, #tpu.memory_space<vmem>>, vector<2x4xf32>,
    } else {
    }
    return
  }
  func.func @transform_0(%arg0: i32, %arg1: i32, %arg2: i32) -> (i32, i32, i32) {
    %c0_i32 = arith.constant 0 : i32
    return %arg0, %arg1, %arg2 : i32, i32, i32
  }
  func.func @transform_1(%arg0: i32, %arg1: i32, %arg2: i32) -> (i32, i32) {
    %c0_i32 = arith.constant 0 : i32
    return %arg0, %arg1 : i32, i32
  }
}

</mosaic_0001>

<llo_original>
// kernel: tpu_custom_call.1
$region0: #{tpu_custom_call.1}
  #allocation0 [shape = 'u32[]', space=smem, size = 0x4, offset = 0x4, fixed_abs, tag = 'smem constant byte address 0x4 - core index']
  #allocation1 [shape = 'u32[144,128]{1,0:T(1,128)}', space=vmem, size = 0x12000, scoped, tag = 'internal scratch']
  #allocation2 [shape = 'f32[2,4]{1,0:T(2,128)}', space=vmem, size = 0x400, scoped, tag = 'scratch operand']
  #allocation3 [shape = 'f32[2,4]{1,0:T(2,128)}', space=vmem, size = 0x400, scoped, tag = 'scratch operand']
  %s0 = inlined_call_operand.hbm [shape: f32[2,4,256], index: 0, kind: input, shape index: {}]
  %s1 = inlined_call_operand.hbm [shape: f32[2,4], index: 1, kind: output, shape index: {}]
  %s2 = sld [smem:[#allocation0]]
  $region26: #{tpu_custom_call.1} parent=0
    _
  %s4 = ssub.s32 1, %s2
  %s5 = scalar_select 0, %s4, %s2
  $region1: #{tpu_custom_call.1} parent=0
    #allocation4 [shape = 'u8[8192]{0}', space=vmem, size = 0x2000, scoped, tag = 'input window, operand 0, single buffered']
    #allocation5 [shape = 's32[1]{0}', space=sflag, size = 0x4, scoped, tag = 'scoped memory for tpu_custom_call.1']
    #allocation6 [shape = 's32[1]{0}', space=sflag, size = 0x4, scoped, tag = 'scoped memory for tpu_custom_call.1']
    #allocation7 [shape = 'u8[1024]{0}', space=vmem, size = 0x400, scoped, tag = 'output window, operand 0, single buffered']
    %6 = vsyncpa [#allocation5], 0
    %7 = vsyncpa [#allocation6], 0
    // Predicated region
    $region2: #{tpu_custom_call.1} parent=1 // pred_check
      _
    $region3: #{tpu_custom_call.1} parent=1 // pred_check_branch
      %9 = sbr.rel (0) target = $region5
    $region4: #{tpu_custom_call.1} parent=1 // pred_region
      %s11 = ssub.s32 256, 256
      %12 = vsyncadd [#allocation5], %s11
      %s13 = sshll.u32 [#allocation4], 4
      %s14 = int_to_ptr.vmem [resolvable:$true] %s13
      %19 = dma.hbm_to_vmem [thread:$0]  %s0, 256, %s14, [#allocation5], 128, 128, 8
    $region5: #{tpu_custom_call.1} parent=1 // pred_fallthru
      _
    // Predicated region
    $region6: #{tpu_custom_call.1} parent=1 // pred_check
      _
    $region7: #{tpu_custom_call.1} parent=1 // pred_check_branch
      %21 = sbr.rel (0) target = $region9
    $region8: #{tpu_custom_call.1} parent=1 // pred_region
      %22 = dma.done [#allocation5], 256
    $region9: #{tpu_custom_call.1} parent=1 // pred_fallthru
      _
    %p23 = scmp.eq.s32.totalorder 0, 0
    // Predicated region
    $region10: #{tpu_custom_call.1} parent=1 // pred_check
      %p24 = pneg %p23
    $region11: #{tpu_custom_call.1} parent=1 // pred_check_branch
      %26 = sbr.rel (%p24) target = $region13
    $region12: #{tpu_custom_call.1} parent=1 // pred_region
      %vm27 = vcmask 25600
      %28 = vst.msk [vmem:[#allocation2] sm:$0x3] %vm27, -inf
      %29 = vst.msk [vmem:[#allocation3] sm:$0x3] %vm27, 0.0
    $region13: #{tpu_custom_call.1} parent=1 // pred_fallthru
      _
    %v30 = vld [vmem:[#allocation4] sm:$0xff]
    %v31 = vld [vmem:[#allocation4 + $0x8] sm:$0xff]
    %v34 = vcombine.high %v30, %v30
    %v35 = vcombine.high %v31, %v31
    %vm38 = vcmask 1043456
    %v39 = vsel %vm38, %v30, -inf
    %v40 = vsel %vm38, %v34, -inf
    %v41 = vmax.f32 %v39, %v40
    %42 = vmax.xlane.f32.xlu0 %v41
    %v43 = vpop.xlane.xlu0 %42
    %v44 = vsel %vm38, %v31, -inf
    %v45 = vsel %vm38, %v35, -inf
    %v46 = vmax.f32 %v44, %v45
    %47 = vmax.xlane.f32.xlu0 %v46
    %v48 = vpop.xlane.xlu0 %47
    %v49 = vld [vmem:[#allocation2] sm:$0x3]
    %v52 = vlaneseq
    %v53 = vand.u32 %v52, 127
    %v54 = vlaneseq
    %v55 = vshrl.u32 %v54, 7
    %v56 = vsub.s32 %v53, %v55
    %v57 = vrot.slane %v43, %v56
    %v58 = vlaneseq
    %v59 = vshrl.u32 %v58, 7
    %v60 = vsub.s32 %v53, %v59
    %v61 = vrot.slane %v48, %v60
    %vm62 = vcmask 1041409
    %v63 = vsel %vm62, %v61, %v57
    %v65 = vmax.f32 %v49, %v63
    %v66 = vsub.f32 %v49, %v65
    %v67 = vmul.f32 %v66, 3.0
    %v68 = vmul.f32 %v67, 1.442695
    %v69 = vpow.pop %v68
    %v70 = vlaneseq
    %v71 = vshrl.u32 %v70, 7
    %v72 = vsub.s32 0, %v71
    %v73 = vrot.slane %v65, %v72
    %75 = vbcast.lane.b32.xlu0 %v73, 256
    %v76 = vpop.permute.xlu0 %75
    %v77 = vlaneseq
    %v78 = vshrl.u32 %v77, 7
    %v79 = vsub.s32 1, %v78
    %v80 = vrot.slane %v65, %v79
    %82 = vbcast.lane.b32.xlu0 %v80, 256
    %v83 = vpop.permute.xlu0 %82
    %v87 = vunpack.c.l.s4 839922192
    %v88 = vunpack.c.0.s8 %v87
    %v89 = vlaneseq
    %v90 = vshrl.u32 %v89, 7
    %v91 = vsub.s32 %v88, %v90
    %v92 = vrot.slane %v76, %v91
    %v94 = vunpack.c.l.s4 839922192
    %v95 = vunpack.c.0.s8 %v94
    %v96 = vlaneseq
    %v97 = vshrl.u32 %v96, 7
    %v98 = vsub.s32 %v95, %v97
    %v99 = vrot.slane %v83, %v98
    %v102 = vsub.f32 %v30, %v92
    %v103 = vsub.f32 %v31, %v99
    %v104 = vmul.f32 %v102, 3.0
    %v105 = vmul.f32 %v103, 3.0
    %v106 = vmul.f32 %v104, 1.442695
    %v107 = vpow.pop %v106
    %v108 = vmul.f32 %v105, 1.442695
    %v109 = vpow.pop %v108
    %v110 = vld [vmem:[#allocation3] sm:$0x3]
    %v111 = vmul.f32 %v69, %v110
    %v114 = vcombine.high %v107, %v107
    %v115 = vcombine.high %v109, %v109
    %v118 = vsel %vm38, %v107, 0.0
    %v119 = vsel %vm38, %v114, 0.0
    %v120 = vadd.f32 %v118, %v119
    %121 = vadd.xlane.f32.xlu0 %v120
    %v122 = vpop.xlane.xlu0 %121
    %v123 = vsel %vm38, %v109, 0.0
    %v124 = vsel %vm38, %v115, 0.0
    %v125 = vadd.f32 %v123, %v124
    %126 = vadd.xlane.f32.xlu0 %v125
    %v127 = vpop.xlane.xlu0 %126
    %v130 = vlaneseq
    %v131 = vshrl.u32 %v130, 7
    %v132 = vsub.s32 %v53, %v131
    %v133 = vrot.slane %v122, %v132
    %v134 = vlaneseq
    %v135 = vshrl.u32 %v134, 7
    %v136 = vsub.s32 %v53, %v135
    %v137 = vrot.slane %v127, %v136
    %v138 = vsel %vm62, %v137, %v133
    %v140 = vadd.f32 %v111, %v138
    %vm141 = vcmask 25600
    %142 = vst.msk [vmem:[#allocation3] sm:$0x3] %vm141, %v140
    %143 = vst.msk [vmem:[#allocation2] sm:$0x3] %vm141, %v65
    // Predicated region
    $region14: #{tpu_custom_call.1} parent=1 // pred_check
      %p144 = pneg %p23
    $region15: #{tpu_custom_call.1} parent=1 // pred_check_branch
      %146 = sbr.rel (%p144) target = $region17
    $region16: #{tpu_custom_call.1} parent=1 // pred_region
      %v147 = vld [vmem:[#allocation3] sm:$0x3]
      %v148 = vlog2.pop %v147
      %v149 = vmul.f32 %v148, 0.6931472
      %v150 = vsub.f32 %v149, 5.5451775
      %v151 = vmul.f32 %v150, 0.33333334
      %v152 = vld [vmem:[#allocation2] sm:$0x3]
      %v153 = vadd.f32 %v152, %v151
      %154 = vst.msk [vmem:[#allocation7] sm:$0x3] %vm141, %v153
    $region17: #{tpu_custom_call.1} parent=1 // pred_fallthru
      _
    // Predicated region
    $region18: #{tpu_custom_call.1} parent=1 // pred_check
      _
    $region19: #{tpu_custom_call.1} parent=1 // pred_check_branch
      %156 = sbr.rel (0) target = $region21
    $region20: #{tpu_custom_call.1} parent=1 // pred_region
      %s158 = ssub.s32 32, 32
      %159 = vsyncadd [#allocation6], %s158
      %s161 = sshll.u32 [#allocation7], 4
      %s162 = int_to_ptr.vmem [resolvable:$true] %s161
      %164 = dma.vmem_to_hbm [thread:$0]  %s162, 32, %s1, [#allocation6]
    $region21: #{tpu_custom_call.1} parent=1 // pred_fallthru
      _
    // Predicated region
    $region22: #{tpu_custom_call.1} parent=1 // pred_check
      _
    $region23: #{tpu_custom_call.1} parent=1 // pred_check_branch
      %166 = sbr.rel (0) target = $region25
    $region24: #{tpu_custom_call.1} parent=1 // pred_region
      %167 = dma.done [#allocation6], 32
    $region25: #{tpu_custom_call.1} parent=1 // pred_fallthru
      _
    %168 = vsyncpa [#allocation5], 1
    %169 = vsyncpa [#allocation6], 1

</llo_original>
